<compile_context>
chip_gen: v5e
topology: v5e:2x2
jax: 0.10.0
libtpu: 0.0.40
codegen_flags: <defaults>
</compile_context>

<pallas_src>
import math

import jax
import jax.numpy as jnp
from jax.experimental import pallas as pl
from jax.experimental.pallas import tpu as pltpu


def _round_up(a, m):
    return (a + m - 1) // m * m


def _padded_block_bytes(shape, itemsize):
    """Bytes a 2-D block occupies in VMEM (sublane->8, lane->128 padding)."""
    rows = _round_up(shape[-2], 8) if len(shape) >= 2 else 1
    lanes = _round_up(shape[-1], 128)
    return rows * lanes * itemsize


def _vmem_limit_bytes():
    try:
        cap = int(pltpu.get_tpu_info().vmem_capacity_bytes)
    except Exception:
        cap = 64 * 1024 * 1024  # conservative (v7x per-TC VMEM)
    # Leave ~25% headroom for compiler-internal scratch / pipeline bookkeeping.
    return max(32 * 1024 * 1024, min(int(cap * 3 // 4), 100 * 1024 * 1024))


def _mapper_kernel(x_ref, t_ref, w1x_ref, w1t_ref, b1_ref, w2_ref, b2_ref, o_ref):
    # x_ref: (TR, D)   t_ref: (TR, 1)
    # w1x_ref: (D, Hp)  w1t_ref/b1_ref: (1, Hp)
    # w2_ref: (Hp, Dout)  b2_ref: (1, Dout)   o_ref: (TR, Dout)
    #
    # First linear: concat([x, t]) @ W1^T + b1, with the concat folded away:
    #   x @ W1^T[:D, :] + t * W1^T[D, :] + b1
    h = jnp.dot(x_ref[...], w1x_ref[...], preferred_element_type=jnp.float32)
    h = h + t_ref[...] * w1t_ref[...] + b1_ref[...]

    # ReLU
    h = jnp.maximum(h, 0.0)

    # Second linear (padded rows of W2 are zero, so Hp padding contributes nothing).
    y = jnp.dot(h, w2_ref[...], preferred_element_type=jnp.float32)
    o_ref[...] = (y + b2_ref[...]).astype(o_ref.dtype)


def states_mapper(x, t, w1, b1, w2, b2, *, tile_rows=None):
    """Pallas implementation of StatesMapper.forward.

    x:  (..., D)        t: same leading shape as x minus the last dim
    w1: (D+1, D+1), b1: (D+1,)   -- nn.Linear(n_embd+1, n_embd+1)
    w2: (D,   D+1), b2: (D,)     -- nn.Linear(n_embd+1, n_embd)
    """
    assert x.ndim - t.ndim == 1
    D = x.shape[-1]
    H = D + 1
    Dout = w2.shape[0]
    assert w1.shape == (H, H) and b1.shape == (H,)
    assert w2.shape == (Dout, H) and b2.shape == (Dout,)

    dtype = x.dtype

    # --- replicate the PyTorch t-broadcast logic ------------------------------
    t = t[..., None]                                     # unsqueeze(-1)
    if t.shape[-3] == 1:
        t = jnp.repeat(t, x.shape[-3], axis=-3)          # repeat_interleave(dim=-3)
    if x.ndim == 4 and x.shape[0] != t.shape[0]:
        t = jnp.repeat(t, x.shape[0], axis=0)            # repeat_interleave(dim=0)
    assert t.shape == x.shape[:-1] + (1,)

    rows = math.prod(x.shape[:-1])
    x2 = x.reshape(rows, D)
    t2 = t.reshape(rows, 1).astype(dtype)

    # --- weight prep: Linear does y = z @ W.T + b; zero-pad H -> Hp (x128) ----
    Hp = _round_up(H, 128)
    pad_h = Hp - H
    w1t_full = w1.T.astype(dtype)                            # (H, H) == [in, out]
    w1x = jnp.pad(w1t_full[:D, :], ((0, 0), (0, pad_h)))     # (D, Hp)  multiplies x
    w1t_row = jnp.pad(w1t_full[D:D + 1, :], ((0, 0), (0, pad_h)))  # (1, Hp) multiplies t
    b1r = jnp.pad(b1.reshape(1, H).astype(dtype), ((0, 0), (0, pad_h)))  # (1, Hp)
    w2t = jnp.pad(w2.T.astype(dtype), ((0, pad_h), (0, 0)))  # (Hp, Dout), zero rows
    b2r = b2.reshape(1, Dout).astype(dtype)

    # --- tile sizing from a per-generation VMEM budget ------------------------
    itemsize = jnp.dtype(dtype).itemsize
    vmem_limit = _vmem_limit_bytes()

    # Resident weights/biases (single-buffered; constant index_map).
    weight_bytes = (_padded_block_bytes((D, Hp), itemsize)
                    + 2 * _padded_block_bytes((1, Hp), itemsize)
                    + _padded_block_bytes((Hp, Dout), itemsize)
                    + _padded_block_bytes((1, Dout), itemsize))

    Dl = _round_up(D, 128)
    Doutl = _round_up(Dout, 128)
    # Double-buffered streamed tiles (x, t lane-padded to 128, out) + f32 intermediates.
    per_row_bytes = (2 * itemsize * (Dl + 128 + Doutl)
                     + 4 * (Hp + Doutl))

    avail = max(vmem_limit - weight_bytes - (2 << 20), 8 * per_row_bytes)
    tr = max(8, (avail // per_row_bytes) // 8 * 8)
    if tile_rows is not None:
        tr = min(tr, max(8, _round_up(tile_rows, 8)))
    # Keep >= 2 grid steps whenever rows permit (v7x dual-TensorCore sharding).
    tr = min(tr, _round_up(pl.cdiv(rows, 2), 8), _round_up(rows, 8))
    tr = max(8, tr)

    grid = (pl.cdiv(rows, tr),)   # ragged final block handled by Pallas; no jnp.pad

    def _build(weight_pipeline_mode):
        def wspec(shape):
            if weight_pipeline_mode is None:
                return pl.BlockSpec(shape, lambda i: (0, 0))
            return pl.BlockSpec(shape, lambda i: (0, 0),
                                pipeline_mode=weight_pipeline_mode)

        return pl.pallas_call(
            _mapper_kernel,
            out_shape=jax.ShapeDtypeStruct((rows, Dout), dtype),
            grid_spec=pltpu.PrefetchScalarGridSpec(
                num_scalar_prefetch=0,
                grid=grid,
                in_specs=[
                    pl.BlockSpec((tr, D), lambda i: (i, 0)),   # x rows (streamed)
                    pl.BlockSpec((tr, 1), lambda i: (i, 0)),   # t rows (streamed)
                    wspec((D, Hp)),                            # W1 (x part), resident
                    wspec((1, Hp)),                            # W1 (t row),  resident
                    wspec((1, Hp)),                            # b1,          resident
                    wspec((Hp, Dout)),                         # W2,          resident
                    wspec((1, Dout)),                          # b2,          resident
                ],
                out_specs=pl.BlockSpec((tr, Dout), lambda i: (i, 0)),
            ),
            compiler_params=pltpu.CompilerParams(
                dimension_semantics=("parallel",),
                vmem_limit_bytes=vmem_limit,
            ),
        )

    args = (x2, t2, w1x, w1t_row, b1r, w2t, b2r)
    try:
        out = _build(pl.Buffered(1))(*args)
    except Exception:
        # Fallback: default double-buffered resident weights (still correct; the
        # 25% VMEM headroom above covers the extra buffer at these sizes).
        out = _build(None)(*args)

    return out.reshape(x.shape[:-1] + (Dout,))


if __name__ == "__main__":
    key = jax.random.PRNGKey(0)
    B, N, T, D = 2, 4, 8, 32          # x: (batch, states, seq, n_embd)
    H = D + 1
    k1, k2, k3, k4, k5, k6 = jax.random.split(key, 6)

    x = jax.random.normal(k1, (B, N, T, D), dtype=jnp.float32)
    # t with singleton leading dims exercises both broadcast branches of forward()
    t = jax.random.normal(k2, (1, 1, T), dtype=jnp.float32)

    w1 = 0.1 * jax.random.normal(k3, (H, H), dtype=jnp.float32)
    b1 = 0.1 * jax.random.normal(k4, (H,), dtype=jnp.float32)
    w2 = 0.1 * jax.random.normal(k5, (D, H), dtype=jnp.float32)
    b2 = 0.1 * jax.random.normal(k6, (D,), dtype=jnp.float32)

    y = states_mapper(x, t, w1, b1, w2, b2)
    jax.block_until_ready(y)

    # ---- plain-JAX reference (mirrors the PyTorch forward exactly) -----------
    tb = t[..., None]
    if tb.shape[-3] == 1:
        tb = jnp.repeat(tb, x.shape[-3], axis=-3)
    if x.ndim == 4 and x.shape[0] != tb.shape[0]:
        tb = jnp.repeat(tb, x.shape[0], axis=0)
    z = jnp.concatenate([x, tb], axis=-1)
    h_ref = jnp.maximum(z @ w1.T + b1, 0.0)
    ref = h_ref @ w2.T + b2

    assert y.shape == ref.shape, (y.shape, ref.shape)
    err = float(jnp.max(jnp.abs(y - ref)))
    assert err < 1e-4, f"mismatch vs reference: {err}"

    print("KERNEL_OK")
</pallas_src>

<mosaic_0001>
module attributes {stable_mosaic.version = 11 : i64} {
  func.func @_mapper_kernel(%arg0: i32, %arg1: memref<32x32xf32, #tpu.memory_space<vmem>>, %arg2: memref<32x1xf32, #tpu.memory_space<vmem>>, %arg3: memref<32x128xf32, #tpu.memory_space<vmem>>, %arg4: memref<1x128xf32, #tpu.memory_space<vmem>>, %arg5: memref<1x128xf32, #tpu.memory_space<vmem>>, %arg6: memref<128x32xf32, #tpu.memory_space<vmem>>, %arg7: memref<1x32xf32, #tpu.memory_space<vmem>>, %arg8: memref<32x32xf32, #tpu.memory_space<vmem>>) attributes {dimension_semantics = [#tpu.dimension_semantics<parallel>], iteration_bounds = array<i64: 2>, scalar_prefetch = 0 : i64, scratch_operands = 0 : i64, tpu.core_type = #tpu.core_type<tc>, window_params = [{transform_indices = @transform_0, window_bounds = array<i64: 32, 32>}, {transform_indices = @transform_1, window_bounds = array<i64: 32, 1>}, {pipeline_mode = #tpu.pipeline_mode<synchronous>, transform_indices = @transform_2, window_bounds = array<i64: 32, 128>}, {pipeline_mode = #tpu.pipeline_mode<synchronous>, transform_indices = @transform_3, window_bounds = array<i64: 1, 128>}, {pipeline_mode = #tpu.pipeline_mode<synchronous>, transform_indices = @transform_4, window_bounds = array<i64: 1, 128>}, {pipeline_mode = #tpu.pipeline_mode<synchronous>, transform_indices = @transform_5, window_bounds = array<i64: 128, 32>}, {pipeline_mode = #tpu.pipeline_mode<synchronous>, transform_indices = @transform_6, window_bounds = array<i64: 1, 32>}, {transform_indices = @transform_7, window_bounds = array<i64: 32, 32>}]} {
    %c0 = arith.constant 0 : index
    %c0_0 = arith.constant 0 : index
    %0 = vector.load %arg1[%c0, %c0_0] : memref<32x32xf32, #tpu.memory_space<vmem>>, vector<32x32xf32>
    %c0_1 = arith.constant 0 : index
    %c0_2 = arith.constant 0 : index
    %1 = vector.load %arg3[%c0_1, %c0_2] : memref<32x128xf32, #tpu.memory_space<vmem>>, vector<32x128xf32>
    %cst = arith.constant dense<0.000000e+00> : vector<32x128xf32>
    %2 = tpu.matmul %0, %1, %cst {dimension_numbers = #tpu.dot_dimension_numbers<[1], [0], [0], [1], [0, 0, 1, 1], [], []>} : vector<32x32xf32>, vector<32x128xf32>, vector<32x128xf32> -> vector<32x128xf32>
    %c0_3 = arith.constant 0 : index
    %c0_4 = arith.constant 0 : index
    %3 = vector.load %arg2[%c0_3, %c0_4] : memref<32x1xf32, #tpu.memory_space<vmem>>, vector<32x1xf32>
    %c0_5 = arith.constant 0 : index
    %c0_6 = arith.constant 0 : index
    %4 = vector.load %arg4[%c0_5, %c0_6] : memref<1x128xf32, #tpu.memory_space<vmem>>, vector<1x128xf32>
    %5 = vector.broadcast %3 : vector<32x1xf32> to vector<32x128xf32>
    %6 = vector.broadcast %4 : vector<1x128xf32> to vector<32x128xf32>
    %7 = arith.mulf %5, %6 : vector<32x128xf32>
    %8 = arith.addf %2, %7 : vector<32x128xf32>
    %c0_7 = arith.constant 0 : index
    %c0_8 = arith.constant 0 : index
    %9 = vector.load %arg5[%c0_7, %c0_8] : memref<1x128xf32, #tpu.memory_space<vmem>>, vector<1x128xf32>
    %10 = vector.broadcast %9 : vector<1x128xf32> to vector<32x128xf32>
    %11 = arith.addf %8, %10 : vector<32x128xf32>
    %cst_9 = arith.constant 0.000000e+00 : f32
    %12 = vector.broadcast %cst_9 : f32 to vector<32x128xf32>
    %13 = arith.maximumf %11, %12 : vector<32x128xf32>
    %c0_10 = arith.constant 0 : index
    %c0_11 = arith.constant 0 : index
    %14 = vector.load %arg6[%c0_10, %c0_11] : memref<128x32xf32, #tpu.memory_space<vmem>>, vector<128x32xf32>
    %cst_12 = arith.constant dense<0.000000e+00> : vector<32x32xf32>
    %15 = tpu.matmul %13, %14, %cst_12 {dimension_numbers = #tpu.dot_dimension_numbers<[1], [0], [0], [1], [0, 0, 1, 1], [], []>} : vector<32x128xf32>, vector<128x32xf32>, vector<32x32xf32> -> vector<32x32xf32>
    %c0_13 = arith.constant 0 : index
    %c0_14 = arith.constant 0 : index
    %16 = vector.load %arg7[%c0_13, %c0_14] : memref<1x32xf32, #tpu.memory_space<vmem>>, vector<1x32xf32>
    %17 = vector.broadcast %16 : vector<1x32xf32> to vector<32x32xf32>
    %18 = arith.addf %15, %17 : vector<32x32xf32>
    %c0_15 = arith.constant 0 : index
    %c0_16 = arith.constant 0 : index
    %19 = vector.load %arg8[%c0_15, %c0_16] : memref<32x32xf32, #tpu.memory_space<vmem>>, vector<32x32xf32>
    tpu.vector_store %arg8[%c0_15, %c0_16], %18 {strides = array<i32>} : memref<32x32xf32, #tpu.memory_space<vmem>>, vector<32x32xf32>,
    return
  }
  func.func @transform_0(%arg0: i32) -> (i32, i32) {
    %c0_i32 = arith.constant 0 : i32
    %c0_i32_0 = arith.constant 0 : i32
    return %arg0, %c0_i32 : i32, i32
  }
  func.func @transform_1(%arg0: i32) -> (i32, i32) {
    %c0_i32 = arith.constant 0 : i32
    %c0_i32_0 = arith.constant 0 : i32
    return %arg0, %c0_i32 : i32, i32
  }
  func.func @transform_2(%arg0: i32) -> (i32, i32) {
    %c0_i32 = arith.constant 0 : i32
    %c0_i32_0 = arith.constant 0 : i32
    %c0_i32_1 = arith.constant 0 : i32
    return %c0_i32, %c0_i32_0 : i32, i32
  }
  func.func @transform_3(%arg0: i32) -> (i32, i32) {
    %c0_i32 = arith.constant 0 : i32
    %c0_i32_0 = arith.constant 0 : i32
    %c0_i32_1 = arith.constant 0 : i32
    return %c0_i32, %c0_i32_0 : i32, i32
  }
  func.func @transform_4(%arg0: i32) -> (i32, i32) {
    %c0_i32 = arith.constant 0 : i32
    %c0_i32_0 = arith.constant 0 : i32
    %c0_i32_1 = arith.constant 0 : i32
    return %c0_i32, %c0_i32_0 : i32, i32
  }
  func.func @transform_5(%arg0: i32) -> (i32, i32) {
    %c0_i32 = arith.constant 0 : i32
    %c0_i32_0 = arith.constant 0 : i32
    %c0_i32_1 = arith.constant 0 : i32
    return %c0_i32, %c0_i32_0 : i32, i32
  }
  func.func @transform_6(%arg0: i32) -> (i32, i32) {
    %c0_i32 = arith.constant 0 : i32
    %c0_i32_0 = arith.constant 0 : i32
    %c0_i32_1 = arith.constant 0 : i32
    return %c0_i32, %c0_i32_0 : i32, i32
  }
  func.func @transform_7(%arg0: i32) -> (i32, i32) {
    %c0_i32 = arith.constant 0 : i32
    %c0_i32_0 = arith.constant 0 : i32
    return %arg0, %c0_i32 : i32, i32
  }
}

module attributes {stable_mosaic.version = 11 : i64} {
  func.func @_mapper_kernel(%arg0: i32, %arg1: memref<32x32xf32, #tpu.memory_space<vmem>>, %arg2: memref<32x1xf32, #tpu.memory_space<vmem>>, %arg3: memref<32x128xf32, #tpu.memory_space<vmem>>, %arg4: memref<1x128xf32, #tpu.memory_space<vmem>>, %arg5: memref<1x128xf32, #tpu.memory_space<vmem>>, %arg6: memref<128x32xf32, #tpu.memory_space<vmem>>, %arg7: memref<1x32xf32, #tpu.memory_space<vmem>>, %arg8: memref<32x32xf32, #tpu.memory_space<vmem>>) attributes {dimension_semantics = [#tpu.dimension_semantics<parallel>], iteration_bounds = array<i64: 2>, scalar_prefetch = 0 : i64, scratch_operands = 0 : i64, tpu.core_type = #tpu.core_type<tc>, window_params = [{transform_indices = @transform_0, window_bounds = array<i64: 32, 32>}, {transform_indices = @transform_1, window_bounds = array<i64: 32, 1>}, {pipeline_mode = #tpu.pipeline_mode<synchronous>, transform_indices = @transform_2, window_bounds = array<i64: 32, 128>}, {pipeline_mode = #tpu.pipeline_mode<synchronous>, transform_indices = @transform_3, window_bounds = array<i64: 1, 128>}, {pipeline_mode = #tpu.pipeline_mode<synchronous>, transform_indices = @transform_4, window_bounds = array<i64: 1, 128>}, {pipeline_mode = #tpu.pipeline_mode<synchronous>, transform_indices = @transform_5, window_bounds = array<i64: 128, 32>}, {pipeline_mode = #tpu.pipeline_mode<synchronous>, transform_indices = @transform_6, window_bounds = array<i64: 1, 32>}, {transform_indices = @transform_7, window_bounds = array<i64: 32, 32>}]} {
    %c0 = arith.constant 0 : index
    %c0_0 = arith.constant 0 : index
    %0 = vector.load %arg1[%c0, %c0_0] : memref<32x32xf32, #tpu.memory_space<vmem>>, vector<32x32xf32>
    %c0_1 = arith.constant 0 : index
    %c0_2 = arith.constant 0 : index
    %1 = vector.load %arg3[%c0_1, %c0_2] : memref<32x128xf32, #tpu.memory_space<vmem>>, vector<32x128xf32>
    %cst = arith.constant dense<0.000000e+00> : vector<32x128xf32>
    %2 = tpu.matmul %0, %1, %cst {dimension_numbers = #tpu.dot_dimension_numbers<[1], [0], [0], [1], [0, 0, 1, 1], [], []>} : vector<32x32xf32>, vector<32x128xf32>, vector<32x128xf32> -> vector<32x128xf32>
    %c0_3 = arith.constant 0 : index
    %c0_4 = arith.constant 0 : index
    %3 = vector.load %arg2[%c0_3, %c0_4] : memref<32x1xf32, #tpu.memory_space<vmem>>, vector<32x1xf32>
    %c0_5 = arith.constant 0 : index
    %c0_6 = arith.constant 0 : index
    %4 = vector.load %arg4[%c0_5, %c0_6] : memref<1x128xf32, #tpu.memory_space<vmem>>, vector<1x128xf32>
    %5 = vector.broadcast %3 : vector<32x1xf32> to vector<32x128xf32>
    %6 = vector.broadcast %4 : vector<1x128xf32> to vector<32x128xf32>
    %7 = arith.mulf %5, %6 : vector<32x128xf32>
    %8 = arith.addf %2, %7 : vector<32x128xf32>
    %c0_7 = arith.constant 0 : index
    %c0_8 = arith.constant 0 : index
    %9 = vector.load %arg5[%c0_7, %c0_8] : memref<1x128xf32, #tpu.memory_space<vmem>>, vector<1x128xf32>
    %10 = vector.broadcast %9 : vector<1x128xf32> to vector<32x128xf32>
    %11 = arith.addf %8, %10 : vector<32x128xf32>
    %cst_9 = arith.constant 0.000000e+00 : f32
    %12 = vector.broadcast %cst_9 : f32 to vector<32x128xf32>
    %13 = arith.maximumf %11, %12 : vector<32x128xf32>
    %c0_10 = arith.constant 0 : index
    %c0_11 = arith.constant 0 : index
    %14 = vector.load %arg6[%c0_10, %c0_11] : memref<128x32xf32, #tpu.memory_space<vmem>>, vector<128x32xf32>
    %cst_12 = arith.constant dense<0.000000e+00> : vector<32x32xf32>
    %15 = tpu.matmul %13, %14, %cst_12 {dimension_numbers = #tpu.dot_dimension_numbers<[1], [0], [0], [1], [0, 0, 1, 1], [], []>} : vector<32x128xf32>, vector<128x32xf32>, vector<32x32xf32> -> vector<32x32xf32>
    %c0_13 = arith.constant 0 : index
    %c0_14 = arith.constant 0 : index
    %16 = vector.load %arg7[%c0_13, %c0_14] : memref<1x32xf32, #tpu.memory_space<vmem>>, vector<1x32xf32>
    %17 = vector.broadcast %16 : vector<1x32xf32> to vector<32x32xf32>
    %18 = arith.addf %15, %17 : vector<32x32xf32>
    %c0_15 = arith.constant 0 : index
    %c0_16 = arith.constant 0 : index
    %19 = vector.load %arg8[%c0_15, %c0_16] : memref<32x32xf32, #tpu.memory_space<vmem>>, vector<32x32xf32>
    tpu.vector_store %arg8[%c0_15, %c0_16], %18 {strides = array<i32>} : memref<32x32xf32, #tpu.memory_space<vmem>>, vector<32x32xf32>,
    return
  }
  func.func @transform_0(%arg0: i32) -> (i32, i32) {
    %c0_i32 = arith.constant 0 : i32
    %c0_i32_0 = arith.constant 0 : i32
    return %arg0, %c0_i32 : i32, i32
  }
  func.func @transform_1(%arg0: i32) -> (i32, i32) {
    %c0_i32 = arith.constant 0 : i32
    %c0_i32_0 = arith.constant 0 : i32
    return %arg0, %c0_i32 : i32, i32
  }
  func.func @transform_2(%arg0: i32) -> (i32, i32) {
    %c0_i32 = arith.constant 0 : i32
    %c0_i32_0 = arith.constant 0 : i32
    %c0_i32_1 = arith.constant 0 : i32
    return %c0_i32, %c0_i32_0 : i32, i32
  }
  func.func @transform_3(%arg0: i32) -> (i32, i32) {
    %c0_i32 = arith.constant 0 : i32
    %c0_i32_0 = arith.constant 0 : i32
    %c0_i32_1 = arith.constant 0 : i32
    return %c0_i32, %c0_i32_0 : i32, i32
  }
  func.func @transform_4(%arg0: i32) -> (i32, i32) {
    %c0_i32 = arith.constant 0 : i32
    %c0_i32_0 = arith.constant 0 : i32
    %c0_i32_1 = arith.constant 0 : i32
    return %c0_i32, %c0_i32_0 : i32, i32
  }
  func.func @transform_5(%arg0: i32) -> (i32, i32) {
    %c0_i32 = arith.constant 0 : i32
    %c0_i32_0 = arith.constant 0 : i32
    %c0_i32_1 = arith.constant 0 : i32
    return %c0_i32, %c0_i32_0 : i32, i32
  }
  func.func @transform_6(%arg0: i32) -> (i32, i32) {
    %c0_i32 = arith.constant 0 : i32
    %c0_i32_0 = arith.constant 0 : i32
    %c0_i32_1 = arith.constant 0 : i32
    return %c0_i32, %c0_i32_0 : i32, i32
  }
  func.func @transform_7(%arg0: i32) -> (i32, i32) {
    %c0_i32 = arith.constant 0 : i32
    %c0_i32_0 = arith.constant 0 : i32
    return %arg0, %c0_i32 : i32, i32
  }
}

</mosaic_0001>

<llo_original>
// kernel: tpu_custom_call.1
$region0: #{tpu_custom_call.1}
  #allocation0 [shape = 'u32[]', space=smem, size = 0x4, offset = 0x4, fixed_abs, tag = 'smem constant byte address 0x4 - core index']
  #allocation1 [shape = 'u32[72,128]{1,0:T(1,128)}', space=vmem, size = 0x9000, scoped, tag = 'internal scratch']
  %s0 = inlined_call_operand.vmem [shape: f32[64,32], index: 0, kind: input, shape index: {}]
  %s1 = inlined_call_operand.vmem [shape: f32[64,1], index: 1, kind: input, shape index: {}]
  %s2 = inlined_call_operand.vmem [shape: f32[32,128], index: 2, kind: input, shape index: {}]
  %s3 = inlined_call_operand.vmem [shape: f32[1,128], index: 3, kind: input, shape index: {}]
  %s4 = inlined_call_operand.vmem [shape: f32[1,128], index: 4, kind: input, shape index: {}]
  %s5 = inlined_call_operand.vmem [shape: f32[128,32], index: 5, kind: input, shape index: {}]
  %s6 = inlined_call_operand.vmem [shape: f32[1,32], index: 6, kind: input, shape index: {}]
  %s7 = inlined_call_operand.vmem [shape: f32[64,32], index: 7, kind: output, shape index: {}]
  %s8 = sld [smem:[#allocation0]]
  $region61: #{tpu_custom_call.1} parent=0
    _
  %s10 = ssub.s32 1, %s8
  %s11 = scalar_select 0, %s10, %s8
  loop: start=0, step=1, limit=4
  $region2: #{tpu_custom_call.1} parent=0 // loop_pre_header
    _
  $region3: #{tpu_custom_call.1} parent=0 // loop_header
    %s13 = sphi 0, %s17
    %p14 = scmp.ge.s32.totalorder %s13, 4
    %s23 = sphi 0, %s25
    %s26 = sphi 0, %s23
    %s27 = sphi 0, %s26
    %s43 = sphi 0, %s27
    %s49 = sphi 0, %s51
    %s52 = sphi 0, %s49
    %s53 = sphi 0, %s52
    %s69 = sphi 0, %s53
    %s73 = sphi 0, %s73
    %s75 = sphi 0, %s73
    %s76 = sphi 0, %s75
    %s90 = sphi 0, %s76
    %s94 = sphi 0, %s94
    %s96 = sphi 0, %s94
    %s97 = sphi 0, %s96
    %s111 = sphi 0, %s97
    %s115 = sphi 0, %s115
    %s117 = sphi 0, %s115
    %s118 = sphi 0, %s117
    %s132 = sphi 0, %s118
    %s136 = sphi 0, %s136
    %s138 = sphi 0, %s136
    %s139 = sphi 0, %s138
    %s153 = sphi 0, %s139
    %s157 = sphi 0, %s157
    %s159 = sphi 0, %s157
    %s160 = sphi 0, %s159
    %s174 = sphi 0, %s160
    %s180 = sphi 0, %s182
    %s183 = sphi 0, %s180
    %s184 = sphi 0, %s183
    %s200 = sphi 0, %s184
  $region4: #{tpu_custom_call.1} parent=0 // loop_header_branch
    %16 = sbr.rel (%p14) target = $region8
  $region5: #{tpu_custom_call.1} parent=0 // loop_body
    %s18 = ssub.s32 %s13, 1
    %s19 = ssub.s32 %s13, 2
    %s20 = sadd.s32 %s13, 1
    %s21 = ssub.s32 %s13, %s20
    %p22 = scmp.eq.s32.totalorder %s21, 0
    %s24 = sadd.s32 %s23, 1
    %s25 = scalar_select %p22, %s23, %s24
    %p28 = pneg %p22
    %p29 = scmp.eq.s32.totalorder %s13, 1
    %p30 = por %p28, %p29
    %p31 = scmp.ne.s32.totalorder %s23, %s26
    %p32 = scmp.eq.s32.totalorder %s13, 0
    %p33 = por %p31, %p32
    %p34 = scmp.ne.s32.totalorder %s23, %s26
    %p35 = scmp.eq.s32.totalorder %s18, 1
    %p36 = por %p34, %p35
    %p37 = scmp.ne.s32.totalorder %s26, %s27
    %p38 = scmp.eq.s32.totalorder %s18, 0
    %p39 = por %p37, %p38
    %p40 = scmp.ne.s32.totalorder %s26, %s27
    %p41 = scmp.eq.s32.totalorder %s19, 1
    %p42 = por %p40, %p41
    %p44 = scmp.ne.s32.totalorder %s27, %s43
    %p45 = scmp.eq.s32.totalorder %s19, 0
    %p46 = por %p44, %p45
    %s47 = ssub.s32 %s13, %s20
    %p48 = scmp.eq.s32.totalorder %s47, 0
    %s50 = sadd.s32 %s49, 1
    %s51 = scalar_select %p48, %s49, %s50
    %p54 = pneg %p48
    %p55 = scmp.eq.s32.totalorder %s13, 1
    %p56 = por %p54, %p55
    %p57 = scmp.ne.s32.totalorder %s49, %s52
    %p58 = scmp.eq.s32.totalorder %s13, 0
    %p59 = por %p57, %p58
    %p60 = scmp.ne.s32.totalorder %s49, %s52
    %p61 = scmp.eq.s32.totalorder %s18, 1
    %p62 = por %p60, %p61
    %p63 = scmp.ne.s32.totalorder %s52, %s53
    %p64 = scmp.eq.s32.totalorder %s18, 0
    %p65 = por %p63, %p64
    %p66 = scmp.ne.s32.totalorder %s52, %s53
    %p67 = scmp.eq.s32.totalorder %s19, 1
    %p68 = por %p66, %p67
    %p70 = scmp.ne.s32.totalorder %s53, %s69
    %p71 = scmp.eq.s32.totalorder %s19, 0
    %p72 = por %p70, %p71
    %s74 = sadd.s32 %s73, 1
    %p77 = scmp.eq.s32.totalorder %s13, 1
    %p78 = scmp.ne.s32.totalorder %s73, %s75
    %p79 = scmp.eq.s32.totalorder %s13, 0
    %p80 = por %p78, %p79
    %p81 = scmp.ne.s32.totalorder %s73, %s75
    %p82 = scmp.eq.s32.totalorder %s18, 1
    %p83 = por %p81, %p82
    %p84 = scmp.ne.s32.totalorder %s75, %s76
    %p85 = scmp.eq.s32.totalorder %s18, 0
    %p86 = por %p84, %p85
    %p87 = scmp.ne.s32.totalorder %s75, %s76
    %p88 = scmp.eq.s32.totalorder %s19, 1
    %p89 = por %p87, %p88
    %p91 = scmp.ne.s32.totalorder %s76, %s90
    %p92 = scmp.eq.s32.totalorder %s19, 0
    %p93 = por %p91, %p92
    %s95 = sadd.s32 %s94, 1
    %p98 = scmp.eq.s32.totalorder %s13, 1
    %p99 = scmp.ne.s32.totalorder %s94, %s96
    %p100 = scmp.eq.s32.totalorder %s13, 0
    %p101 = por %p99, %p100
    %p102 = scmp.ne.s32.totalorder %s94, %s96
    %p103 = scmp.eq.s32.totalorder %s18, 1
    %p104 = por %p102, %p103
    %p105 = scmp.ne.s32.totalorder %s96, %s97
    %p106 = scmp.eq.s32.totalorder %s18, 0
    %p107 = por %p105, %p106
    %p108 = scmp.ne.s32.totalorder %s96, %s97
    %p109 = scmp.eq.s32.totalorder %s19, 1
    %p110 = por %p108, %p109
    %p112 = scmp.ne.s32.totalorder %s97, %s111
    %p113 = scmp.eq.s32.totalorder %s19, 0
    %p114 = por %p112, %p113
    %s116 = sadd.s32 %s115, 1
    %p119 = scmp.eq.s32.totalorder %s13, 1
    %p120 = scmp.ne.s32.totalorder %s115, %s117
    %p121 = scmp.eq.s32.totalorder %s13, 0
    %p122 = por %p120, %p121
    %p123 = scmp.ne.s32.totalorder %s115, %s117
    %p124 = scmp.eq.s32.totalorder %s18, 1
    %p125 = por %p123, %p124
    %p126 = scmp.ne.s32.totalorder %s117, %s118
    %p127 = scmp.eq.s32.totalorder %s18, 0
    %p128 = por %p126, %p127
    %p129 = scmp.ne.s32.totalorder %s117, %s118
    %p130 = scmp.eq.s32.totalorder %s19, 1
    %p131 = por %p129, %p130
    %p133 = scmp.ne.s32.totalorder %s118, %s132
    %p134 = scmp.eq.s32.totalorder %s19, 0
    %p135 = por %p133, %p134
    %s137 = sadd.s32 %s136, 1
    %p140 = scmp.eq.s32.totalorder %s13, 1
    %p141 = scmp.ne.s32.totalorder %s136, %s138
    %p142 = scmp.eq.s32.totalorder %s13, 0
    %p143 = por %p141, %p142
    %p144 = scmp.ne.s32.totalorder %s136, %s138
    %p145 = scmp.eq.s32.totalorder %s18, 1
    %p146 = por %p144, %p145
    %p147 = scmp.ne.s32.totalorder %s138, %s139
    %p148 = scmp.eq.s32.totalorder %s18, 0
    %p149 = por %p147, %p148
    %p150 = scmp.ne.s32.totalorder %s138, %s139
    %p151 = scmp.eq.s32.totalorder %s19, 1
    %p152 = por %p150, %p151
    %p154 = scmp.ne.s32.totalorder %s139, %s153
    %p155 = scmp.eq.s32.totalorder %s19, 0
    %p156 = por %p154, %p155
    %s158 = sadd.s32 %s157, 1
    %p161 = scmp.eq.s32.totalorder %s13, 1
    %p162 = scmp.ne.s32.totalorder %s157, %s159
    %p163 = scmp.eq.s32.totalorder %s13, 0
    %p164 = por %p162, %p163
    %p165 = scmp.ne.s32.totalorder %s157, %s159
    %p166 = scmp.eq.s32.totalorder %s18, 1
    %p167 = por %p165, %p166
    %p168 = scmp.ne.s32.totalorder %s159, %s160
    %p169 = scmp.eq.s32.totalorder %s18, 0
    %p170 = por %p168, %p169
    %p171 = scmp.ne.s32.totalorder %s159, %s160
    %p172 = scmp.eq.s32.totalorder %s19, 1
    %p173 = por %p171, %p172
    %p175 = scmp.ne.s32.totalorder %s160, %s174
    %p176 = scmp.eq.s32.totalorder %s19, 0
    %p177 = por %p175, %p176
    %s178 = ssub.s32 %s13, %s20
    %p179 = scmp.eq.s32.totalorder %s178, 0
    %s181 = sadd.s32 %s180, 1
    %s182 = scalar_select %p179, %s180, %s181
    %p185 = pneg %p179
    %p186 = scmp.eq.s32.totalorder %s13, 1
    %p187 = por %p185, %p186
    %p188 = scmp.ne.s32.totalorder %s180, %s183
    %p189 = scmp.eq.s32.totalorder %s13, 0
    %p190 = por %p188, %p189
    %p191 = scmp.ne.s32.totalorder %s180, %s183
    %p192 = scmp.eq.s32.totalorder %s18, 1
    %p193 = por %p191, %p192
    %p194 = scmp.ne.s32.totalorder %s183, %s184
    %p195 = scmp.eq.s32.totalorder %s18, 0
    %p196 = por %p194, %p195
    %p197 = scmp.ne.s32.totalorder %s183, %s184
    %p198 = scmp.eq.s32.totalorder %s19, 1
    %p199 = por %p197, %p198
    %p201 = scmp.ne.s32.totalorder %s184, %s200
    %p202 = scmp.eq.s32.totalorder %s19, 0
    %p203 = por %p201, %p202
    %p204 = scmp.le.s32.totalorder 1, %s13
    %p205 = scmp.lt.s32.totalorder %s13, 3
    %p206 = pnand %p204, %p205
    %p207 = pneg %p206
    // Predicated region
    $region9: #{tpu_custom_call.1} parent=5 // pred_check
      _
    $region10: #{tpu_custom_call.1} parent=5 // pred_check_branch
      %209 = sbr.rel (%p206) target = $region12
    $region11: #{tpu_custom_call.1} parent=5 // pred_region
      %s210 = ssub.s32 %s13, 1
      // Predicated region
      $region13: #{tpu_custom_call.1} parent=11 // pred_check
        %p211 = pneg %p86
      $region14: #{tpu_custom_call.1} parent=11 // pred_check_branch
        %213 = sbr.rel (%p211) target = $region16
      $region15: #{tpu_custom_call.1} parent=11 // pred_region
        _
      $region16: #{tpu_custom_call.1} parent=11 // pred_fallthru
        _
      // Predicated region
      $region17: #{tpu_custom_call.1} parent=11 // pred_check
        %p214 = pneg %p107
      $region18: #{tpu_custom_call.1} parent=11 // pred_check_branch
        %216 = sbr.rel (%p214) target = $region20
      $region19: #{tpu_custom_call.1} parent=11 // pred_region
        _
      $region20: #{tpu_custom_call.1} parent=11 // pred_fallthru
        _
      // Predicated region
      $region21: #{tpu_custom_call.1} parent=11 // pred_check
        %p217 = pneg %p128
      $region22: #{tpu_custom_call.1} parent=11 // pred_check_branch
        %219 = sbr.rel (%p217) target = $region24
      $region23: #{tpu_custom_call.1} parent=11 // pred_region
        _
      $region24: #{tpu_custom_call.1} parent=11 // pred_fallthru
        _
      // Predicated region
      $region25: #{tpu_custom_call.1} parent=11 // pred_check
        %p220 = pneg %p149
      $region26: #{tpu_custom_call.1} parent=11 // pred_check_branch
        %222 = sbr.rel (%p220) target = $region28
      $region27: #{tpu_custom_call.1} parent=11 // pred_region
        _
      $region28: #{tpu_custom_call.1} parent=11 // pred_fallthru
        _
      // Predicated region
      $region29: #{tpu_custom_call.1} parent=11 // pred_check
        %p223 = pneg %p170
      $region30: #{tpu_custom_call.1} parent=11 // pred_check_branch
        %225 = sbr.rel (%p223) target = $region32
      $region31: #{tpu_custom_call.1} parent=11 // pred_region
        _
      $region32: #{tpu_custom_call.1} parent=11 // pred_fallthru
        _
    $region12: #{tpu_custom_call.1} parent=5 // pred_fallthru
      _
    %p226 = scmp.lt.s32.totalorder %s13, 2
    // Predicated region
    $region33: #{tpu_custom_call.1} parent=5 // pred_check
      %p227 = pneg %p226
    $region34: #{tpu_custom_call.1} parent=5 // pred_check_branch
      %229 = sbr.rel (%p227) target = $region36
    $region35: #{tpu_custom_call.1} parent=5 // pred_region
      // Predicated region
      $region37: #{tpu_custom_call.1} parent=35 // pred_check
        %p230 = pneg %p33
      $region38: #{tpu_custom_call.1} parent=35 // pred_check_branch
        %232 = sbr.rel (%p230) target = $region40
      $region39: #{tpu_custom_call.1} parent=35 // pred_region
        %s233 = smul.u32 4, %s13
        %p234 = scmp.lt.s32.totalorder %s233, 7
        %s235 = scalar_select %p234, %s233, 7
        %s236 = smul.addr %s235, 8
        %s237 = scalar_lea.vmem %s0, %s236
        %s238 = smul.u32 4, %s13
      $region40: #{tpu_custom_call.1} parent=35 // pred_fallthru
        _
      // Predicated region
      $region41: #{tpu_custom_call.1} parent=35 // pred_check
        %p239 = pneg %p59
      $region42: #{tpu_custom_call.1} parent=35 // pred_check_branch
        %241 = sbr.rel (%p239) target = $region44
      $region43: #{tpu_custom_call.1} parent=35 // pred_region
        %s242 = smul.u32 4, %s13
        %p243 = scmp.lt.s32.totalorder %s242, 7
        %s244 = scalar_select %p243, %s242, 7
        %s245 = smul.addr %s244, 8
        %s246 = scalar_lea.vmem %s1, %s245
        %s247 = smul.u32 4, %s13
      $region44: #{tpu_custom_call.1} parent=35 // pred_fallthru
        _
    $region36: #{tpu_custom_call.1} parent=5 // pred_fallthru
      _
    %p248 = scmp.le.s32.totalorder 1, %s13
    %p249 = scmp.lt.s32.totalorder %s13, 3
    %p250 = pnand %p248, %p249
    %p251 = pneg %p250
    // Predicated region
    $region45: #{tpu_custom_call.1} parent=5 // pred_check
      _
    $region46: #{tpu_custom_call.1} parent=5 // pred_check_branch
      %253 = sbr.rel (%p250) target = $region48
    $region47: #{tpu_custom_call.1} parent=5 // pred_region
      %s254 = ssub.s32 %s13, 1
      %s255 = smul.u32 4, %s18
      %p256 = scmp.lt.s32.totalorder %s255, 7
      %s257 = scalar_select %p256, %s255, 7
      %s258 = smul.addr %s257, 8
      %s259 = scalar_lea.vmem %s0, %s258
      %p260 = pneg %p39
      %p261 = pneg %p36
      %s262 = smul.u32 4, %s18
      %p263 = scmp.lt.s32.totalorder %s262, 7
      %s264 = scalar_select %p263, %s262, 7
      %s265 = smul.addr %s264, 8
      %s266 = scalar_lea.vmem %s1, %s265
      %p267 = pneg %p65
      %p268 = pneg %p62
      %p269 = pneg %p86
      %p270 = pneg %p83
      %p271 = pneg %p107
      %p272 = pneg %p104
      %p273 = pneg %p128
      %p274 = pneg %p125
      %p275 = pneg %p149
      %p276 = pneg %p146
      %p277 = pneg %p170
      %p278 = pneg %p167
      %p279 = pneg %p196
      %p280 = pneg %p193
      %s281 = smul.u32 4, %s18
      %p282 = scmp.lt.s32.totalorder %s281, 7
      %s283 = scalar_select %p282, %s281, 7
      %s284 = smul.addr %s283, 8
      %s285 = scalar_lea.vmem %s7, %s284
      %s286 = smul.u32 4, %s18
      %p287 = scmp.lt.s32.totalorder %s286, 7
      %s288 = scalar_select %p287, %s286, 7
      %s289 = smul.addr %s288, 8
      %s290 = scalar_lea.vmem %s0, %s289
      %s291 = smul.u32 4, %s18
      %s292 = smul.u32 4, %s18
      %p293 = scmp.lt.s32.totalorder %s292, 7
      %s294 = scalar_select %p293, %s292, 7
      %s295 = smul.addr %s294, 8
      %s296 = scalar_lea.vmem %s1, %s295
      %s297 = smul.u32 4, %s18
      %s298 = smul.u32 4, %s18
      %p299 = scmp.lt.s32.totalorder %s298, 7
      %s300 = scalar_select %p299, %s298, 7
      %s301 = smul.addr %s300, 8
      %s302 = scalar_lea.vmem %s7, %s301
      %s303 = smul.u32 4, %s18
      %v304 = vld [vmem:[%s290] sm:$0xff]
      %v305 = vld [vmem:[%s290 + $0x8] sm:$0xff]
      %v306 = vld [vmem:[%s290 + $0x10] sm:$0xff]
      %v307 = vld [vmem:[%s290 + $0x18] sm:$0xff]
      %v308 = vld [vmem:[%s2] sm:$0xff]
      %v309 = vld [vmem:[%s2 + $0x8] sm:$0xff]
      %v310 = vld [vmem:[%s2 + $0x10] sm:$0xff]
      %v311 = vld [vmem:[%s2 + $0x18] sm:$0xff]
      %v312 = vld [vmem:[%s296] sm:$0xff]
      %v313 = vld [vmem:[%s296 + $0x8] sm:$0xff]
      %v314 = vld [vmem:[%s296 + $0x10] sm:$0xff]
      %v315 = vld [vmem:[%s296 + $0x18] sm:$0xff]
      %v316 = vld [vmem:[%s3] sm:$0x1]
      %318 = vset.pattern.permute.xlu0 0
      %319 = vperm.xlu0 %318, %v312
      %v320 = vpop.permute.xlu0 %319
      %323 = vset.pattern.permute.xlu0 0
      %324 = vperm.xlu0 %323, %v313
      %v325 = vpop.permute.xlu0 %324
      %328 = vset.pattern.permute.xlu0 0
      %329 = vperm.xlu0 %328, %v314
      %v330 = vpop.permute.xlu0 %329
      %333 = vset.pattern.permute.xlu0 0
      %334 = vperm.xlu0 %333, %v315
      %v335 = vpop.permute.xlu0 %334
      %v338 = vperm.slane %v316, 0
      %v340 = vmul.f32 %v320, %v338
      %v341 = vmul.f32 %v325, %v338
      %v342 = vmul.f32 %v330, %v338
      %v343 = vmul.f32 %v335, %v338
      %vm344 = vcmask 261120
      %v346 = vsel %vm344, %v304, 0
      %v349 = vsel %vm344, %v305, 0
      %v352 = vsel %vm344, %v306, 0
      %v355 = vsel %vm344, %v307, 0
      %357 = vmatpush.msra.mxu0 0.0
      %358 = vmatpush.msra.mxu0 0.0
      %359 = vmatpush.msra.mxu0 0.0
      %360 = vmatpush.msra.mxu0 0.0
      %361 = vmatpush.msra.mxu0 0.0
      %362 = vmatpush.msra.mxu0 0.0
      %363 = vmatpush.msra.mxu0 0.0
      %364 = vmatpush.msra.mxu0 0.0
      %365 = vmatpush.msra.mxu0 0.0
      %366 = vmatpush.msra.mxu0 0.0
      %367 = vmatpush.msra.mxu0 0.0
      %368 = vmatpush.msra.mxu0 0.0
      %369 = vmatpush.msra.mxu0 %v311
      %370 = vmatpush.msra.mxu0 %v310
      %371 = vmatpush.msra.mxu0 %v309
      %372 = vmatpush.msra.mxu0 %v308
      %373 = vmatmul.f32.gmra.mxu0 %v346
      %v374 = vpop.f32.mrf.mxu0
      %v375 = vadd.f32 %v340, %v374
      %376 = vmatmul.f32.gmra.mxu0 %v349
      %v377 = vpop.f32.mrf.mxu0
      %v378 = vadd.f32 %v341, %v377
      %379 = vmatmul.f32.gmra.mxu0 %v352
      %v380 = vpop.f32.mrf.mxu0
      %v381 = vadd.f32 %v342, %v380
      %382 = vmatmul.f32.gmra.mxu0 %v355
      %v383 = vpop.f32.mrf.mxu0
      %v384 = vadd.f32 %v343, %v383
      %385 = vdwg.mxu0
      %v386 = vld [vmem:[%s4] sm:$0x1]
      %v388 = vperm.slane %v386, 0
      %v390 = vadd.f32 %v375, %v388
      %v391 = vadd.f32 %v378, %v388
      %v392 = vadd.f32 %v381, %v388
      %v393 = vadd.f32 %v384, %v388
      %v394 = vmax.f32 %v390, 0.0
      %v395 = vmax.f32 %v391, 0.0
      %v396 = vmax.f32 %v392, 0.0
      %v397 = vmax.f32 %v393, 0.0
      %v398 = vld [vmem:[%s5] sm:$0xff]
      %v399 = vld [vmem:[%s5 + $0x8] sm:$0xff]
      %v400 = vld [vmem:[%s5 + $0x10] sm:$0xff]
      %v401 = vld [vmem:[%s5 + $0x18] sm:$0xff]
      %v402 = vld [vmem:[%s5 + $0x20] sm:$0xff]
      %v403 = vld [vmem:[%s5 + $0x28] sm:$0xff]
      %v404 = vld [vmem:[%s5 + $0x30] sm:$0xff]
      %v405 = vld [vmem:[%s5 + $0x38] sm:$0xff]
      %v406 = vld [vmem:[%s5 + $0x40] sm:$0xff]
      %v407 = vld [vmem:[%s5 + $0x48] sm:$0xff]
      %v408 = vld [vmem:[%s5 + $0x50] sm:$0xff]
      %v409 = vld [vmem:[%s5 + $0x58] sm:$0xff]
      %v410 = vld [vmem:[%s5 + $0x60] sm:$0xff]
      %v411 = vld [vmem:[%s5 + $0x68] sm:$0xff]
      %v412 = vld [vmem:[%s5 + $0x70] sm:$0xff]
      %v413 = vld [vmem:[%s5 + $0x78] sm:$0xff]
      %v414 = vld [vmem:[%s6] sm:$0x1]
      %v416 = vperm.slane %v414, 0
      %418 = vmatpush.msra.mxu0 %v413
      %419 = vmatpush.msra.mxu0 %v412
      %420 = vmatpush.msra.mxu0 %v411
      %421 = vmatpush.msra.mxu0 %v410
      %422 = vmatpush.msra.mxu0 %v409
      %423 = vmatpush.msra.mxu0 %v408
      %424 = vmatpush.msra.mxu0 %v407
      %425 = vmatpush.msra.mxu0 %v406
      %426 = vmatpush.msra.mxu0 %v405
      %427 = vmatpush.msra.mxu0 %v404
      %428 = vmatpush.msra.mxu0 %v403
      %429 = vmatpush.msra.mxu0 %v402
      %430 = vmatpush.msra.mxu0 %v401
      %431 = vmatpush.msra.mxu0 %v400
      %432 = vmatpush.msra.mxu0 %v399
      %433 = vmatpush.msra.mxu0 %v398
      %434 = vmatmul.f32.gmra.mxu0 %v394
      %v435 = vpop.f32.mrf.mxu0
      %v436 = vadd.f32 %v416, %v435
      %437 = vmatmul.f32.gmra.mxu0 %v395
      %v438 = vpop.f32.mrf.mxu0
      %v439 = vadd.f32 %v416, %v438
      %440 = vmatmul.f32.gmra.mxu0 %v396
      %v441 = vpop.f32.mrf.mxu0
      %v442 = vadd.f32 %v416, %v441
      %443 = vmatmul.f32.gmra.mxu0 %v397
      %v444 = vpop.f32.mrf.mxu0
      %v445 = vadd.f32 %v416, %v444
      %446 = vdwg.mxu0
      %447 = vst.msk [vmem:[%s302] sm:$0xff] %vm344, %v436
      %448 = vst.msk [vmem:[%s302 + $0x8] sm:$0xff] %vm344, %v439
      %449 = vst.msk [vmem:[%s302 + $0x10] sm:$0xff] %vm344, %v442
      %450 = vst.msk [vmem:[%s302 + $0x18] sm:$0xff] %vm344, %v445
      %s451 = smul.u32 4, %s18
      %p452 = scmp.lt.s32.totalorder %s451, 7
      %s453 = scalar_select %p452, %s451, 7
      %s454 = smul.addr %s453, 8
      %s455 = scalar_lea.vmem %s7, %s454
      // Predicated region
      $region49: #{tpu_custom_call.1} parent=47 // pred_check
        %p456 = pneg %p193
      $region50: #{tpu_custom_call.1} parent=47 // pred_check_branch
        %458 = sbr.rel (%p456) target = $region52
      $region51: #{tpu_custom_call.1} parent=47 // pred_region
        %s459 = smul.u32 4, %s18
      $region52: #{tpu_custom_call.1} parent=47 // pred_fallthru
        _
    $region48: #{tpu_custom_call.1} parent=5 // pred_fallthru
      _
    %p460 = scmp.le.s32.totalorder 2, %s13
    // Predicated region
    $region53: #{tpu_custom_call.1} parent=5 // pred_check
      %p461 = pneg %p460
    $region54: #{tpu_custom_call.1} parent=5 // pred_check_branch
      %463 = sbr.rel (%p461) target = $region56
    $region55: #{tpu_custom_call.1} parent=5 // pred_region
      %s464 = ssub.s32 %s13, 2
      // Predicated region
      $region57: #{tpu_custom_call.1} parent=55 // pred_check
        %p465 = pneg %p199
      $region58: #{tpu_custom_call.1} parent=55 // pred_check_branch
        %467 = sbr.rel (%p465) target = $region60
      $region59: #{tpu_custom_call.1} parent=55 // pred_region
        %s468 = smul.u32 4, %s19
        %p469 = scmp.lt.s32.totalorder %s468, 7
        %s470 = scalar_select %p469, %s468, 7
        %s471 = smul.addr %s470, 8
        %s472 = scalar_lea.vmem %s7, %s471
      $region60: #{tpu_custom_call.1} parent=55 // pred_fallthru
        _
    $region56: #{tpu_custom_call.1} parent=5 // pred_fallthru
      _
  $region6: #{tpu_custom_call.1} parent=0 // loop_footer
    %s17 = sadd.s32 1, %s13
  $region7: #{tpu_custom_call.1} parent=0 // loop_footer_branch
    %12 = sbr.rel target = $region3
  $region8: #{tpu_custom_call.1} parent=0 // loop_exit
    _

// kernel: tpu_custom_call.1
$region0: #{tpu_custom_call.1}
  #allocation0 [shape = 'u32[]', space=smem, size = 0x4, offset = 0x4, fixed_abs, tag = 'smem constant byte address 0x4 - core index']
  #allocation1 [shape = 'u32[72,128]{1,0:T(1,128)}', space=vmem, size = 0x9000, scoped, tag = 'internal scratch']
  %s0 = inlined_call_operand.vmem [shape: f32[64,32], index: 0, kind: input, shape index: {}]
  %s1 = inlined_call_operand.vmem [shape: f32[64,1], index: 1, kind: input, shape index: {}]
  %s2 = inlined_call_operand.vmem [shape: f32[32,128], index: 2, kind: input, shape index: {}]
  %s3 = inlined_call_operand.vmem [shape: f32[1,128], index: 3, kind: input, shape index: {}]
  %s4 = inlined_call_operand.vmem [shape: f32[1,128], index: 4, kind: input, shape index: {}]
  %s5 = inlined_call_operand.vmem [shape: f32[128,32], index: 5, kind: input, shape index: {}]
  %s6 = inlined_call_operand.vmem [shape: f32[1,32], index: 6, kind: input, shape index: {}]
  %s7 = inlined_call_operand.vmem [shape: f32[64,32], index: 7, kind: output, shape index: {}]
  %s8 = sld [smem:[#allocation0]]
  $region61: #{tpu_custom_call.1} parent=0
    _
  %s10 = ssub.s32 1, %s8
  %s11 = scalar_select 0, %s10, %s8
  loop: start=0, step=1, limit=4
  $region2: #{tpu_custom_call.1} parent=0 // loop_pre_header
    _
  $region3: #{tpu_custom_call.1} parent=0 // loop_header
    %s13 = sphi 0, %s17
    %p14 = scmp.ge.s32.totalorder %s13, 4
    %s23 = sphi 0, %s25
    %s26 = sphi 0, %s23
    %s27 = sphi 0, %s26
    %s43 = sphi 0, %s27
    %s49 = sphi 0, %s51
    %s52 = sphi 0, %s49
    %s53 = sphi 0, %s52
    %s69 = sphi 0, %s53
    %s73 = sphi 0, %s73
    %s75 = sphi 0, %s73
    %s76 = sphi 0, %s75
    %s90 = sphi 0, %s76
    %s94 = sphi 0, %s94
    %s96 = sphi 0, %s94
    %s97 = sphi 0, %s96
    %s111 = sphi 0, %s97
    %s115 = sphi 0, %s115
    %s117 = sphi 0, %s115
    %s118 = sphi 0, %s117
    %s132 = sphi 0, %s118
    %s136 = sphi 0, %s136
    %s138 = sphi 0, %s136
    %s139 = sphi 0, %s138
    %s153 = sphi 0, %s139
    %s157 = sphi 0, %s157
    %s159 = sphi 0, %s157
    %s160 = sphi 0, %s159
    %s174 = sphi 0, %s160
    %s180 = sphi 0, %s182
    %s183 = sphi 0, %s180
    %s184 = sphi 0, %s183
    %s200 = sphi 0, %s184
  $region4: #{tpu_custom_call.1} parent=0 // loop_header_branch
    %16 = sbr.rel (%p14) target = $region8
  $region5: #{tpu_custom_call.1} parent=0 // loop_body
    %s18 = ssub.s32 %s13, 1
    %s19 = ssub.s32 %s13, 2
    %s20 = sadd.s32 %s13, 1
    %s21 = ssub.s32 %s13, %s20
    %p22 = scmp.eq.s32.totalorder %s21, 0
    %s24 = sadd.s32 %s23, 1
    %s25 = scalar_select %p22, %s23, %s24
    %p28 = pneg %p22
    %p29 = scmp.eq.s32.totalorder %s13, 1
    %p30 = por %p28, %p29
    %p31 = scmp.ne.s32.totalorder %s23, %s26
    %p32 = scmp.eq.s32.totalorder %s13, 0
    %p33 = por %p31, %p32
    %p34 = scmp.ne.s32.totalorder %s23, %s26
    %p35 = scmp.eq.s32.totalorder %s18, 1
    %p36 = por %p34, %p35
    %p37 = scmp.ne.s32.totalorder %s26, %s27
    %p38 = scmp.eq.s32.totalorder %s18, 0
    %p39 = por %p37, %p38
    %p40 = scmp.ne.s32.totalorder %s26, %s27
    %p41 = scmp.eq.s32.totalorder %s19, 1
    %p42 = por %p40, %p41
    %p44 = scmp.ne.s32.totalorder %s27, %s43
    %p45 = scmp.eq.s32.totalorder %s19, 0
    %p46 = por %p44, %p45
    %s47 = ssub.s32 %s13, %s20
    %p48 = scmp.eq.s32.totalorder %s47, 0
    %s50 = sadd.s32 %s49, 1
    %s51 = scalar_select %p48, %s49, %s50
    %p54 = pneg %p48
    %p55 = scmp.eq.s32.totalorder %s13, 1
    %p56 = por %p54, %p55
    %p57 = scmp.ne.s32.totalorder %s49, %s52
    %p58 = scmp.eq.s32.totalorder %s13, 0
    %p59 = por %p57, %p58
    %p60 = scmp.ne.s32.totalorder %s49, %s52
    %p61 = scmp.eq.s32.totalorder %s18, 1
    %p62 = por %p60, %p61
    %p63 = scmp.ne.s32.totalorder %s52, %s53
    %p64 = scmp.eq.s32.totalorder %s18, 0
    %p65 = por %p63, %p64
    %p66 = scmp.ne.s32.totalorder %s52, %s53
    %p67 = scmp.eq.s32.totalorder %s19, 1
    %p68 = por %p66, %p67
    %p70 = scmp.ne.s32.totalorder %s53, %s69
    %p71 = scmp.eq.s32.totalorder %s19, 0
    %p72 = por %p70, %p71
    %s74 = sadd.s32 %s73, 1
    %p77 = scmp.eq.s32.totalorder %s13, 1
    %p78 = scmp.ne.s32.totalorder %s73, %s75
    %p79 = scmp.eq.s32.totalorder %s13, 0
    %p80 = por %p78, %p79
    %p81 = scmp.ne.s32.totalorder %s73, %s75
    %p82 = scmp.eq.s32.totalorder %s18, 1
    %p83 = por %p81, %p82
    %p84 = scmp.ne.s32.totalorder %s75, %s76
    %p85 = scmp.eq.s32.totalorder %s18, 0
    %p86 = por %p84, %p85
    %p87 = scmp.ne.s32.totalorder %s75, %s76
    %p88 = scmp.eq.s32.totalorder %s19, 1
    %p89 = por %p87, %p88
    %p91 = scmp.ne.s32.totalorder %s76, %s90
    %p92 = scmp.eq.s32.totalorder %s19, 0
    %p93 = por %p91, %p92
    %s95 = sadd.s32 %s94, 1
    %p98 = scmp.eq.s32.totalorder %s13, 1
    %p99 = scmp.ne.s32.totalorder %s94, %s96
    %p100 = scmp.eq.s32.totalorder %s13, 0
    %p101 = por %p99, %p100
    %p102 = scmp.ne.s32.totalorder %s94, %s96
    %p103 = scmp.eq.s32.totalorder %s18, 1
    %p104 = por %p102, %p103
    %p105 = scmp.ne.s32.totalorder %s96, %s97
    %p106 = scmp.eq.s32.totalorder %s18, 0
    %p107 = por %p105, %p106
    %p108 = scmp.ne.s32.totalorder %s96, %s97
    %p109 = scmp.eq.s32.totalorder %s19, 1
    %p110 = por %p108, %p109
    %p112 = scmp.ne.s32.totalorder %s97, %s111
    %p113 = scmp.eq.s32.totalorder %s19, 0
    %p114 = por %p112, %p113
    %s116 = sadd.s32 %s115, 1
    %p119 = scmp.eq.s32.totalorder %s13, 1
    %p120 = scmp.ne.s32.totalorder %s115, %s117
    %p121 = scmp.eq.s32.totalorder %s13, 0
    %p122 = por %p120, %p121
    %p123 = scmp.ne.s32.totalorder %s115, %s117
    %p124 = scmp.eq.s32.totalorder %s18, 1
    %p125 = por %p123, %p124
    %p126 = scmp.ne.s32.totalorder %s117, %s118
    %p127 = scmp.eq.s32.totalorder %s18, 0
    %p128 = por %p126, %p127
    %p129 = scmp.ne.s32.totalorder %s117, %s118
    %p130 = scmp.eq.s32.totalorder %s19, 1
    %p131 = por %p129, %p130
    %p133 = scmp.ne.s32.totalorder %s118, %s132
    %p134 = scmp.eq.s32.totalorder %s19, 0
    %p135 = por %p133, %p134
    %s137 = sadd.s32 %s136, 1
    %p140 = scmp.eq.s32.totalorder %s13, 1
    %p141 = scmp.ne.s32.totalorder %s136, %s138
    %p142 = scmp.eq.s32.totalorder %s13, 0
    %p143 = por %p141, %p142
    %p144 = scmp.ne.s32.totalorder %s136, %s138
    %p145 = scmp.eq.s32.totalorder %s18, 1
    %p146 = por %p144, %p145
    %p147 = scmp.ne.s32.totalorder %s138, %s139
    %p148 = scmp.eq.s32.totalorder %s18, 0
    %p149 = por %p147, %p148
    %p150 = scmp.ne.s32.totalorder %s138, %s139
    %p151 = scmp.eq.s32.totalorder %s19, 1
    %p152 = por %p150, %p151
    %p154 = scmp.ne.s32.totalorder %s139, %s153
    %p155 = scmp.eq.s32.totalorder %s19, 0
    %p156 = por %p154, %p155
    %s158 = sadd.s32 %s157, 1
    %p161 = scmp.eq.s32.totalorder %s13, 1
    %p162 = scmp.ne.s32.totalorder %s157, %s159
    %p163 = scmp.eq.s32.totalorder %s13, 0
    %p164 = por %p162, %p163
    %p165 = scmp.ne.s32.totalorder %s157, %s159
    %p166 = scmp.eq.s32.totalorder %s18, 1
    %p167 = por %p165, %p166
    %p168 = scmp.ne.s32.totalorder %s159, %s160
    %p169 = scmp.eq.s32.totalorder %s18, 0
    %p170 = por %p168, %p169
    %p171 = scmp.ne.s32.totalorder %s159, %s160
    %p172 = scmp.eq.s32.totalorder %s19, 1
    %p173 = por %p171, %p172
    %p175 = scmp.ne.s32.totalorder %s160, %s174
    %p176 = scmp.eq.s32.totalorder %s19, 0
    %p177 = por %p175, %p176
    %s178 = ssub.s32 %s13, %s20
    %p179 = scmp.eq.s32.totalorder %s178, 0
    %s181 = sadd.s32 %s180, 1
    %s182 = scalar_select %p179, %s180, %s181
    %p185 = pneg %p179
    %p186 = scmp.eq.s32.totalorder %s13, 1
    %p187 = por %p185, %p186
    %p188 = scmp.ne.s32.totalorder %s180, %s183
    %p189 = scmp.eq.s32.totalorder %s13, 0
    %p190 = por %p188, %p189
    %p191 = scmp.ne.s32.totalorder %s180, %s183
    %p192 = scmp.eq.s32.totalorder %s18, 1
    %p193 = por %p191, %p192
    %p194 = scmp.ne.s32.totalorder %s183, %s184
    %p195 = scmp.eq.s32.totalorder %s18, 0
    %p196 = por %p194, %p195
    %p197 = scmp.ne.s32.totalorder %s183, %s184
    %p198 = scmp.eq.s32.totalorder %s19, 1
    %p199 = por %p197, %p198
    %p201 = scmp.ne.s32.totalorder %s184, %s200
    %p202 = scmp.eq.s32.totalorder %s19, 0
    %p203 = por %p201, %p202
    %p204 = scmp.le.s32.totalorder 1, %s13
    %p205 = scmp.lt.s32.totalorder %s13, 3
    %p206 = pnand %p204, %p205
    %p207 = pneg %p206
    // Predicated region
    $region9: #{tpu_custom_call.1} parent=5 // pred_check
      _
    $region10: #{tpu_custom_call.1} parent=5 // pred_check_branch
      %209 = sbr.rel (%p206) target = $region12
    $region11: #{tpu_custom_call.1} parent=5 // pred_region
      %s210 = ssub.s32 %s13, 1
      // Predicated region
      $region13: #{tpu_custom_call.1} parent=11 // pred_check
        %p211 = pneg %p86
      $region14: #{tpu_custom_call.1} parent=11 // pred_check_branch
        %213 = sbr.rel (%p211) target = $region16
      $region15: #{tpu_custom_call.1} parent=11 // pred_region
        _
      $region16: #{tpu_custom_call.1} parent=11 // pred_fallthru
        _
      // Predicated region
      $region17: #{tpu_custom_call.1} parent=11 // pred_check
        %p214 = pneg %p107
      $region18: #{tpu_custom_call.1} parent=11 // pred_check_branch
        %216 = sbr.rel (%p214) target = $region20
      $region19: #{tpu_custom_call.1} parent=11 // pred_region
        _
      $region20: #{tpu_custom_call.1} parent=11 // pred_fallthru
        _
      // Predicated region
      $region21: #{tpu_custom_call.1} parent=11 // pred_check
        %p217 = pneg %p128
      $region22: #{tpu_custom_call.1} parent=11 // pred_check_branch
        %219 = sbr.rel (%p217) target = $region24
      $region23: #{tpu_custom_call.1} parent=11 // pred_region
        _
      $region24: #{tpu_custom_call.1} parent=11 // pred_fallthru
        _
      // Predicated region
      $region25: #{tpu_custom_call.1} parent=11 // pred_check
        %p220 = pneg %p149
      $region26: #{tpu_custom_call.1} parent=11 // pred_check_branch
        %222 = sbr.rel (%p220) target = $region28
      $region27: #{tpu_custom_call.1} parent=11 // pred_region
        _
      $region28: #{tpu_custom_call.1} parent=11 // pred_fallthru
        _
      // Predicated region
      $region29: #{tpu_custom_call.1} parent=11 // pred_check
        %p223 = pneg %p170
      $region30: #{tpu_custom_call.1} parent=11 // pred_check_branch
        %225 = sbr.rel (%p223) target = $region32
      $region31: #{tpu_custom_call.1} parent=11 // pred_region
        _
      $region32: #{tpu_custom_call.1} parent=11 // pred_fallthru
        _
    $region12: #{tpu_custom_call.1} parent=5 // pred_fallthru
      _
    %p226 = scmp.lt.s32.totalorder %s13, 2
    // Predicated region
    $region33: #{tpu_custom_call.1} parent=5 // pred_check
      %p227 = pneg %p226
    $region34: #{tpu_custom_call.1} parent=5 // pred_check_branch
      %229 = sbr.rel (%p227) target = $region36
    $region35: #{tpu_custom_call.1} parent=5 // pred_region
      // Predicated region
      $region37: #{tpu_custom_call.1} parent=35 // pred_check
        %p230 = pneg %p33
      $region38: #{tpu_custom_call.1} parent=35 // pred_check_branch
        %232 = sbr.rel (%p230) target = $region40
      $region39: #{tpu_custom_call.1} parent=35 // pred_region
        %s233 = smul.u32 4, %s13
        %p234 = scmp.lt.s32.totalorder %s233, 7
        %s235 = scalar_select %p234, %s233, 7
        %s236 = smul.addr %s235, 8
        %s237 = scalar_lea.vmem %s0, %s236
        %s238 = smul.u32 4, %s13
      $region40: #{tpu_custom_call.1} parent=35 // pred_fallthru
        _
      // Predicated region
      $region41: #{tpu_custom_call.1} parent=35 // pred_check
        %p239 = pneg %p59
      $region42: #{tpu_custom_call.1} parent=35 // pred_check_branch
        %241 = sbr.rel (%p239) target = $region44
      $region43: #{tpu_custom_call.1} parent=35 // pred_region
        %s242 = smul.u32 4, %s13
        %p243 = scmp.lt.s32.totalorder %s242, 7
        %s244 = scalar_select %p243, %s242, 7
        %s245 = smul.addr %s244, 8
        %s246 = scalar_lea.vmem %s1, %s245
        %s247 = smul.u32 4, %s13
      $region44: #{tpu_custom_call.1} parent=35 // pred_fallthru
        _
    $region36: #{tpu_custom_call.1} parent=5 // pred_fallthru
      _
    %p248 = scmp.le.s32.totalorder 1, %s13
    %p249 = scmp.lt.s32.totalorder %s13, 3
    %p250 = pnand %p248, %p249
    %p251 = pneg %p250
    // Predicated region
    $region45: #{tpu_custom_call.1} parent=5 // pred_check
      _
    $region46: #{tpu_custom_call.1} parent=5 // pred_check_branch
      %253 = sbr.rel (%p250) target = $region48
    $region47: #{tpu_custom_call.1} parent=5 // pred_region
      %s254 = ssub.s32 %s13, 1
      %s255 = smul.u32 4, %s18
      %p256 = scmp.lt.s32.totalorder %s255, 7
      %s257 = scalar_select %p256, %s255, 7
      %s258 = smul.addr %s257, 8
      %s259 = scalar_lea.vmem %s0, %s258
      %p260 = pneg %p39
      %p261 = pneg %p36
      %s262 = smul.u32 4, %s18
      %p263 = scmp.lt.s32.totalorder %s262, 7
      %s264 = scalar_select %p263, %s262, 7
      %s265 = smul.addr %s264, 8
      %s266 = scalar_lea.vmem %s1, %s265
      %p267 = pneg %p65
      %p268 = pneg %p62
      %p269 = pneg %p86
      %p270 = pneg %p83
      %p271 = pneg %p107
      %p272 = pneg %p104
      %p273 = pneg %p128
      %p274 = pneg %p125
      %p275 = pneg %p149
      %p276 = pneg %p146
      %p277 = pneg %p170
      %p278 = pneg %p167
      %p279 = pneg %p196
      %p280 = pneg %p193
      %s281 = smul.u32 4, %s18
      %p282 = scmp.lt.s32.totalorder %s281, 7
      %s283 = scalar_select %p282, %s281, 7
      %s284 = smul.addr %s283, 8
      %s285 = scalar_lea.vmem %s7, %s284
      %s286 = smul.u32 4, %s18
      %p287 = scmp.lt.s32.totalorder %s286, 7
      %s288 = scalar_select %p287, %s286, 7
      %s289 = smul.addr %s288, 8
      %s290 = scalar_lea.vmem %s0, %s289
      %s291 = smul.u32 4, %s18
      %s292 = smul.u32 4, %s18
      %p293 = scmp.lt.s32.totalorder %s292, 7
      %s294 = scalar_select %p293, %s292, 7
      %s295 = smul.addr %s294, 8
      %s296 = scalar_lea.vmem %s1, %s295
      %s297 = smul.u32 4, %s18
      %s298 = smul.u32 4, %s18
      %p299 = scmp.lt.s32.totalorder %s298, 7
      %s300 = scalar_select %p299, %s298, 7
      %s301 = smul.addr %s300, 8
      %s302 = scalar_lea.vmem %s7, %s301
      %s303 = smul.u32 4, %s18
      %v304 = vld [vmem:[%s290] sm:$0xff]
      %v305 = vld [vmem:[%s290 + $0x8] sm:$0xff]
      %v306 = vld [vmem:[%s290 + $0x10] sm:$0xff]
      %v307 = vld [vmem:[%s290 + $0x18] sm:$0xff]
      %v308 = vld [vmem:[%s2] sm:$0xff]
      %v309 = vld [vmem:[%s2 + $0x8] sm:$0xff]
      %v310 = vld [vmem:[%s2 + $0x10] sm:$0xff]
      %v311 = vld [vmem:[%s2 + $0x18] sm:$0xff]
      %v312 = vld [vmem:[%s296] sm:$0xff]
      %v313 = vld [vmem:[%s296 + $0x8] sm:$0xff]
      %v314 = vld [vmem:[%s296 + $0x10] sm:$0xff]
      %v315 = vld [vmem:[%s296 + $0x18] sm:$0xff]
      %v316 = vld [vmem:[%s3] sm:$0x1]
      %318 = vset.pattern.permute.xlu0 0
      %319 = vperm.xlu0 %318, %v312
      %v320 = vpop.permute.xlu0 %319
      %323 = vset.pattern.permute.xlu0 0
      %324 = vperm.xlu0 %323, %v313
      %v325 = vpop.permute.xlu0 %324
      %328 = vset.pattern.permute.xlu0 0
      %329 = vperm.xlu0 %328, %v314
      %v330 = vpop.permute.xlu0 %329
      %333 = vset.pattern.permute.xlu0 0
      %334 = vperm.xlu0 %333, %v315
      %v335 = vpop.permute.xlu0 %334
      %v338 = vperm.slane %v316, 0
      %v340 = vmul.f32 %v320, %v338
      %v341 = vmul.f32 %v325, %v338
      %v342 = vmul.f32 %v330, %v338
      %v343 = vmul.f32 %v335, %v338
      %vm344 = vcmask 261120
      %v346 = vsel %vm344, %v304, 0
      %v349 = vsel %vm344, %v305, 0
      %v352 = vsel %vm344, %v306, 0
      %v355 = vsel %vm344, %v307, 0
      %357 = vmatpush.msra.mxu0 0.0
      %358 = vmatpush.msra.mxu0 0.0
      %359 = vmatpush.msra.mxu0 0.0
      %360 = vmatpush.msra.mxu0 0.0
      %361 = vmatpush.msra.mxu0 0.0
      %362 = vmatpush.msra.mxu0 0.0
      %363 = vmatpush.msra.mxu0 0.0
      %364 = vmatpush.msra.mxu0 0.0
      %365 = vmatpush.msra.mxu0 0.0
      %366 = vmatpush.msra.mxu0 0.0
      %367 = vmatpush.msra.mxu0 0.0
      %368 = vmatpush.msra.mxu0 0.0
      %369 = vmatpush.msra.mxu0 %v311
      %370 = vmatpush.msra.mxu0 %v310
      %371 = vmatpush.msra.mxu0 %v309
      %372 = vmatpush.msra.mxu0 %v308
      %373 = vmatmul.f32.gmra.mxu0 %v346
      %v374 = vpop.f32.mrf.mxu0
      %v375 = vadd.f32 %v340, %v374
      %376 = vmatmul.f32.gmra.mxu0 %v349
      %v377 = vpop.f32.mrf.mxu0
      %v378 = vadd.f32 %v341, %v377
      %379 = vmatmul.f32.gmra.mxu0 %v352
      %v380 = vpop.f32.mrf.mxu0
      %v381 = vadd.f32 %v342, %v380
      %382 = vmatmul.f32.gmra.mxu0 %v355
      %v383 = vpop.f32.mrf.mxu0
      %v384 = vadd.f32 %v343, %v383
      %385 = vdwg.mxu0
      %v386 = vld [vmem:[%s4] sm:$0x1]
      %v388 = vperm.slane %v386, 0
      %v390 = vadd.f32 %v375, %v388
      %v391 = vadd.f32 %v378, %v388
      %v392 = vadd.f32 %v381, %v388
      %v393 = vadd.f32 %v384, %v388
      %v394 = vmax.f32 %v390, 0.0
      %v395 = vmax.f32 %v391, 0.0
      %v396 = vmax.f32 %v392, 0.0
      %v397 = vmax.f32 %v393, 0.0
      %v398 = vld [vmem:[%s5] sm:$0xff]
      %v399 = vld [vmem:[%s5 + $0x8] sm:$0xff]
      %v400 = vld [vmem:[%s5 + $0x10] sm:$0xff]
      %v401 = vld [vmem:[%s5 + $0x18] sm:$0xff]
      %v402 = vld [vmem:[%s5 + $0x20] sm:$0xff]
      %v403 = vld [vmem:[%s5 + $0x28] sm:$0xff]
      %v404 = vld [vmem:[%s5 + $0x30] sm:$0xff]
      %v405 = vld [vmem:[%s5 + $0x38] sm:$0xff]
      %v406 = vld [vmem:[%s5 + $0x40] sm:$0xff]
      %v407 = vld [vmem:[%s5 + $0x48] sm:$0xff]
      %v408 = vld [vmem:[%s5 + $0x50] sm:$0xff]
      %v409 = vld [vmem:[%s5 + $0x58] sm:$0xff]
      %v410 = vld [vmem:[%s5 + $0x60] sm:$0xff]
      %v411 = vld [vmem:[%s5 + $0x68] sm:$0xff]
      %v412 = vld [vmem:[%s5 + $0x70] sm:$0xff]
      %v413 = vld [vmem:[%s5 + $0x78] sm:$0xff]
      %v414 = vld [vmem:[%s6] sm:$0x1]
      %v416 = vperm.slane %v414, 0
      %418 = vmatpush.msra.mxu0 %v413
      %419 = vmatpush.msra.mxu0 %v412
      %420 = vmatpush.msra.mxu0 %v411
      %421 = vmatpush.msra.mxu0 %v410
      %422 = vmatpush.msra.mxu0 %v409
      %423 = vmatpush.msra.mxu0 %v408
      %424 = vmatpush.msra.mxu0 %v407
      %425 = vmatpush.msra.mxu0 %v406
      %426 = vmatpush.msra.mxu0 %v405
      %427 = vmatpush.msra.mxu0 %v404
      %428 = vmatpush.msra.mxu0 %v403
      %429 = vmatpush.msra.mxu0 %v402
      %430 = vmatpush.msra.mxu0 %v401
      %431 = vmatpush.msra.mxu0 %v400
      %432 = vmatpush.msra.mxu0 %v399
      %433 = vmatpush.msra.mxu0 %v398
      %434 = vmatmul.f32.gmra.mxu0 %v394
      %v435 = vpop.f32.mrf.mxu0
      %v436 = vadd.f32 %v416, %v435
      %437 = vmatmul.f32.gmra.mxu0 %v395
      %v438 = vpop.f32.mrf.mxu0
      %v439 = vadd.f32 %v416, %v438
      %440 = vmatmul.f32.gmra.mxu0 %v396
      %v441 = vpop.f32.mrf.mxu0
      %v442 = vadd.f32 %v416, %v441
      %443 = vmatmul.f32.gmra.mxu0 %v397
      %v444 = vpop.f32.mrf.mxu0
      %v445 = vadd.f32 %v416, %v444
      %446 = vdwg.mxu0
      %447 = vst.msk [vmem:[%s302] sm:$0xff] %vm344, %v436
      %448 = vst.msk [vmem:[%s302 + $0x8] sm:$0xff] %vm344, %v439
      %449 = vst.msk [vmem:[%s302 + $0x10] sm:$0xff] %vm344, %v442
      %450 = vst.msk [vmem:[%s302 + $0x18] sm:$0xff] %vm344, %v445
      %s451 = smul.u32 4, %s18
      %p452 = scmp.lt.s32.totalorder %s451, 7
      %s453 = scalar_select %p452, %s451, 7
      %s454 = smul.addr %s453, 8
      %s455 = scalar_lea.vmem %s7, %s454
      // Predicated region
      $region49: #{tpu_custom_call.1} parent=47 // pred_check
        %p456 = pneg %p193
      $region50: #{tpu_custom_call.1} parent=47 // pred_check_branch
        %458 = sbr.rel (%p456) target = $region52
      $region51: #{tpu_custom_call.1} parent=47 // pred_region
        %s459 = smul.u32 4, %s18
      $region52: #{tpu_custom_call.1} parent=47 // pred_fallthru
        _
    $region48: #{tpu_custom_call.1} parent=5 // pred_fallthru
      _
    %p460 = scmp.le.s32.totalorder 2, %s13
    // Predicated region
    $region53: #{tpu_custom_call.1} parent=5 // pred_check
      %p461 = pneg %p460
    $region54: #{tpu_custom_call.1} parent=5 // pred_check_branch
      %463 = sbr.rel (%p461) target = $region56
    $region55: #{tpu_custom_call.1} parent=5 // pred_region
      %s464 = ssub.s32 %s13, 2
      // Predicated region
      $region57: #{tpu_custom_call.1} parent=55 // pred_check
        %p465 = pneg %p199
      $region58: #{tpu_custom_call.1} parent=55 // pred_check_branch
        %467 = sbr.rel (%p465) target = $region60
      $region59: #{tpu_custom_call.1} parent=55 // pred_region
        %s468 = smul.u32 4, %s19
        %p469 = scmp.lt.s32.totalorder %s468, 7
        %s470 = scalar_select %p469, %s468, 7
        %s471 = smul.addr %s470, 8
        %s472 = scalar_lea.vmem %s7, %s471
      $region60: #{tpu_custom_call.1} parent=55 // pred_fallthru
        _
    $region56: #{tpu_custom_call.1} parent=5 // pred_fallthru
      _
  $region6: #{tpu_custom_call.1} parent=0 // loop_footer
    %s17 = sadd.s32 1, %s13
  $region7: #{tpu_custom_call.1} parent=0 // loop_footer_branch
    %12 = sbr.rel target = $region3
  $region8: #{tpu_custom_call.1} parent=0 // loop_exit
    _

</llo_original>
